<compile_context>
chip_gen: v7x
topology: tpu7x:2x2x1
jax: 0.10.0
libtpu: 0.0.40
codegen_flags: <defaults>
</compile_context>

<pallas_src>
import functools

import jax
import jax.numpy as jnp
from jax.experimental import pallas as pl
from jax.experimental.pallas import tpu as pltpu


def _multi_model_kernel(x_ref, we_ref, be_ref, wp_ref, bp_ref, wh_ref, bh_ref,
                        out_ref):
    # In-kernel f32 -> bf16 cast of the input tile (free VPU filler while the
    # kernel is HBM-bound on x); all matmuls accumulate in f32 on the MXU.
    x = x_ref[...].astype(jnp.bfloat16)
    # encoder: Linear + ReLU
    h = jnp.dot(x, we_ref[...], preferred_element_type=jnp.float32)
    h = jnp.maximum(h + be_ref[...], 0.0).astype(jnp.bfloat16)
    # processor: Linear + ReLU
    h = jnp.dot(h, wp_ref[...], preferred_element_type=jnp.float32)
    h = jnp.maximum(h + bp_ref[...], 0.0).astype(jnp.bfloat16)
    # fused decoder heads: one lane-dense matmul, unmasked 128-lane store
    out_ref[...] = (
        jnp.dot(h, wh_ref[...], preferred_element_type=jnp.float32) + bh_ref[...]
    )


def _round_up(n, m):
    return ((n + m - 1) // m) * m


def pack_params(params):
    """Fuse heads, zero-pad FEAT and head lanes to 128, cast weights to bf16.

    Called ONCE; the packed dict should stay device-resident across calls.
    """
    in_dim, feat = params["enc_w"].shape
    num_classes = params["cls_w"].shape[1]
    head_dim = num_classes + 1                      # classification + regression

    feat_pad = _round_up(max(feat, 128), 128)
    head_pad = _round_up(max(head_dim, 128), 128)

    def pad_to(a, rows, cols):
        return jnp.pad(a, ((0, rows - a.shape[0]), (0, cols - a.shape[1])))

    head_w = jnp.concatenate([params["cls_w"], params["reg_w"]], axis=1)
    head_b = jnp.concatenate([params["cls_b"], params["reg_b"]], axis=1)

    return {
        "enc_w":  pad_to(params["enc_w"], in_dim, feat_pad).astype(jnp.bfloat16),
        "enc_b":  pad_to(params["enc_b"], 1, feat_pad).astype(jnp.float32),
        "proc_w": pad_to(params["proc_w"], feat_pad, feat_pad).astype(jnp.bfloat16),
        "proc_b": pad_to(params["proc_b"], 1, feat_pad).astype(jnp.float32),
        "head_w": pad_to(head_w, feat_pad, head_pad).astype(jnp.bfloat16),
        "head_b": pad_to(head_b, 1, head_pad).astype(jnp.float32),
    }


def _choose_tm(B, in_dim, feat_pad, head_pad):
    """Largest batch-row tile that fits a conservative VMEM budget, with >=2
    grid blocks for B > 16 so both v7x TensorCores get work."""
    if B <= 16:
        return B                                    # single full block
    # bf16 weights, double-buffered by the pipeline
    weight_bytes = 2 * 2 * (in_dim * feat_pad + feat_pad * feat_pad
                            + feat_pad * head_pad)
    budget = 16 * 1024 * 1024 - weight_bytes        # ~half the 32 MiB scoped limit
    per_row = 2 * in_dim * 4 + 2 * head_pad * 4     # f32 x + f32 out, double-buffered
    tm_cap = max(8, min(1024, (budget // per_row) // 8 * 8))
    tm_half = _round_up(pl.cdiv(B, 2), 8)           # guarantee >= 2 blocks
    return max(8, min(tm_cap, tm_half))


@functools.partial(jax.jit, static_argnames=("num_classes",))
def multi_model_forward(x_nchw, packed, *, num_classes):
    """Fused MultiModel forward. Returns {'classification': [B,NC], 'regression': [B,1]}."""
    B = x_nchw.shape[0]
    in_dim = x_nchw.shape[1] * x_nchw.shape[2] * x_nchw.shape[3]
    x_flat = x_nchw.reshape(B, -1)                  # free bitcast; stays f32

    feat_pad = packed["enc_w"].shape[1]
    head_pad = packed["head_w"].shape[1]

    tm = _choose_tm(B, in_dim, feat_pad, head_pad)
    grid = (pl.cdiv(B, tm),)                        # ragged last block handled by Pallas

    flops = 2 * B * (in_dim * feat_pad + feat_pad * feat_pad + feat_pad * head_pad)
    bytes_accessed = (B * in_dim * 4 + B * head_pad * 4
                      + 2 * (in_dim * feat_pad + feat_pad * feat_pad
                             + feat_pad * head_pad)
                      + 4 * (2 * feat_pad + head_pad))

    out = pl.pallas_call(
        _multi_model_kernel,
        out_shape=jax.ShapeDtypeStruct((B, head_pad), jnp.float32),
        grid_spec=pltpu.PrefetchScalarGridSpec(
            num_scalar_prefetch=0,
            grid=grid,
            in_specs=[
                pl.BlockSpec((tm, in_dim), lambda i: (i, 0)),           # x tile (f32)
                pl.BlockSpec((in_dim, feat_pad), lambda i: (0, 0)),     # enc_w (resident)
                pl.BlockSpec((1, feat_pad), lambda i: (0, 0)),          # enc_b
                pl.BlockSpec((feat_pad, feat_pad), lambda i: (0, 0)),   # proc_w
                pl.BlockSpec((1, feat_pad), lambda i: (0, 0)),          # proc_b
                pl.BlockSpec((feat_pad, head_pad), lambda i: (0, 0)),   # fused head_w
                pl.BlockSpec((1, head_pad), lambda i: (0, 0)),          # fused head_b
            ],
            out_specs=pl.BlockSpec((tm, head_pad), lambda i: (i, 0)),
        ),
        compiler_params=pltpu.CompilerParams(
            dimension_semantics=("parallel",),      # megacore-shards batch on v7x
            vmem_limit_bytes=32 * 1024 * 1024,
        ),
        cost_estimate=pl.CostEstimate(
            flops=flops, transcendentals=0, bytes_accessed=bytes_accessed),
    )(x_flat, packed["enc_w"], packed["enc_b"], packed["proc_w"],
      packed["proc_b"], packed["head_w"], packed["head_b"])

    return {
        "classification": out[:, :num_classes],
        "regression": out[:, num_classes:num_classes + 1],
    }


def init_params(key, in_dim, feat_dim, num_classes):
    """Deterministic f32 parameter init. Weights are [in, out], biases are [1, out]."""
    ks = jax.random.split(key, 8)
    scale = 0.02
    return {
        "enc_w":  scale * jax.random.normal(ks[0], (in_dim, feat_dim), jnp.float32),
        "enc_b":  scale * jax.random.normal(ks[1], (1, feat_dim), jnp.float32),
        "proc_w": scale * jax.random.normal(ks[2], (feat_dim, feat_dim), jnp.float32),
        "proc_b": scale * jax.random.normal(ks[3], (1, feat_dim), jnp.float32),
        "cls_w":  scale * jax.random.normal(ks[4], (feat_dim, num_classes), jnp.float32),
        "cls_b":  scale * jax.random.normal(ks[5], (1, num_classes), jnp.float32),
        "reg_w":  scale * jax.random.normal(ks[6], (feat_dim, 1), jnp.float32),
        "reg_b":  scale * jax.random.normal(ks[7], (1, 1), jnp.float32),
    }


def _reference_forward(x_nchw, params):
    """Pure-JAX f32 reference mirroring the PyTorch MultiModel forward."""
    B = x_nchw.shape[0]
    x = x_nchw.reshape(B, -1).astype(jnp.float32)
    feat = jnp.maximum(x @ params["enc_w"] + params["enc_b"], 0.0)       # encoder
    feat = jnp.maximum(feat @ params["proc_w"] + params["proc_b"], 0.0)  # processor
    return {
        "classification": feat @ params["cls_w"] + params["cls_b"],
        "regression":     feat @ params["reg_w"] + params["reg_b"],
    }


if __name__ == "__main__":
    # Small shapes: batch=2, channels=4, spatial=16x16, feature dim=32, 10 classes.
    B, C, H, W = 2, 4, 16, 16
    FEAT, NUM_CLASSES = 32, 10

    key = jax.random.PRNGKey(0)
    k_x, k_p = jax.random.split(key)
    x = jax.random.normal(k_x, (B, C, H, W), jnp.float32)   # NCHW, like PyTorch
    params = init_params(k_p, C * H * W, FEAT, NUM_CLASSES)

    packed = pack_params(params)                    # packed once, stays device-resident
    packed = jax.tree.map(jax.block_until_ready, packed)

    outputs = multi_model_forward(x, packed, num_classes=NUM_CLASSES)
    jax.block_until_ready(outputs)

    ref = _reference_forward(x, params)
    for name in outputs:
        assert outputs[name].shape == ref[name].shape, name
        # bf16 MXU operands (f32 accumulation) vs pure-f32 reference: loosen tolerance.
        assert jnp.allclose(outputs[name], ref[name], atol=2e-3, rtol=2e-2), name

    print("KERNEL_OK")
</pallas_src>

<mosaic_0001>
module attributes {stable_mosaic.version = 11 : i64} {
  func.func @_multi_model_kernel(%arg0: i32, %arg1: memref<2x1024xf32, #tpu.memory_space<vmem>>, %arg2: memref<1024x128xbf16, #tpu.memory_space<vmem>>, %arg3: memref<1x128xf32, #tpu.memory_space<vmem>>, %arg4: memref<128x128xbf16, #tpu.memory_space<vmem>>, %arg5: memref<1x128xf32, #tpu.memory_space<vmem>>, %arg6: memref<128x128xbf16, #tpu.memory_space<vmem>>, %arg7: memref<1x128xf32, #tpu.memory_space<vmem>>, %arg8: memref<2x128xf32, #tpu.memory_space<vmem>>) attributes {dimension_semantics = [#tpu.dimension_semantics<parallel>], iteration_bounds = array<i64: 1>, scalar_prefetch = 0 : i64, scratch_operands = 0 : i64, tpu.core_type = #tpu.core_type<tc>, window_params = [{transform_indices = @transform_0, window_bounds = array<i64: 2, 1024>}, {pipeline_mode = #tpu.pipeline_mode<synchronous>, transform_indices = @transform_1, window_bounds = array<i64: 1024, 128>}, {pipeline_mode = #tpu.pipeline_mode<synchronous>, transform_indices = @transform_2, window_bounds = array<i64: 1, 128>}, {pipeline_mode = #tpu.pipeline_mode<synchronous>, transform_indices = @transform_3, window_bounds = array<i64: 128, 128>}, {pipeline_mode = #tpu.pipeline_mode<synchronous>, transform_indices = @transform_4, window_bounds = array<i64: 1, 128>}, {pipeline_mode = #tpu.pipeline_mode<synchronous>, transform_indices = @transform_5, window_bounds = array<i64: 128, 128>}, {pipeline_mode = #tpu.pipeline_mode<synchronous>, transform_indices = @transform_6, window_bounds = array<i64: 1, 128>}, {transform_indices = @transform_7, window_bounds = array<i64: 2, 128>}]} {
    %c0 = arith.constant 0 : index
    %c0_0 = arith.constant 0 : index
    %0 = vector.load %arg1[%c0, %c0_0] : memref<2x1024xf32, #tpu.memory_space<vmem>>, vector<2x1024xf32>
    %1 = arith.truncf %0 : vector<2x1024xf32> to vector<2x1024xbf16>
    %c0_1 = arith.constant 0 : index
    %c0_2 = arith.constant 0 : index
    %2 = vector.load %arg2[%c0_1, %c0_2] : memref<1024x128xbf16, #tpu.memory_space<vmem>>, vector<1024x128xbf16>
    %cst = arith.constant dense<0.000000e+00> : vector<2x128xf32>
    %3 = tpu.matmul %1, %2, %cst {dimension_numbers = #tpu.dot_dimension_numbers<[1], [0], [0], [1], [0, 0, 1, 1], [], []>} : vector<2x1024xbf16>, vector<1024x128xbf16>, vector<2x128xf32> -> vector<2x128xf32>
    %c0_3 = arith.constant 0 : index
    %c0_4 = arith.constant 0 : index
    %4 = vector.load %arg3[%c0_3, %c0_4] : memref<1x128xf32, #tpu.memory_space<vmem>>, vector<1x128xf32>
    %5 = vector.broadcast %4 : vector<1x128xf32> to vector<2x128xf32>
    %6 = arith.addf %3, %5 : vector<2x128xf32>
    %cst_5 = arith.constant 0.000000e+00 : f32
    %7 = vector.broadcast %cst_5 : f32 to vector<2x128xf32>
    %8 = arith.maximumf %6, %7 : vector<2x128xf32>
    %9 = arith.truncf %8 : vector<2x128xf32> to vector<2x128xbf16>
    %c0_6 = arith.constant 0 : index
    %c0_7 = arith.constant 0 : index
    %10 = vector.load %arg4[%c0_6, %c0_7] : memref<128x128xbf16, #tpu.memory_space<vmem>>, vector<128x128xbf16>
    %cst_8 = arith.constant dense<0.000000e+00> : vector<2x128xf32>
    %11 = tpu.matmul %9, %10, %cst_8 {dimension_numbers = #tpu.dot_dimension_numbers<[1], [0], [0], [1], [0, 0, 1, 1], [], []>} : vector<2x128xbf16>, vector<128x128xbf16>, vector<2x128xf32> -> vector<2x128xf32>
    %c0_9 = arith.constant 0 : index
    %c0_10 = arith.constant 0 : index
    %12 = vector.load %arg5[%c0_9, %c0_10] : memref<1x128xf32, #tpu.memory_space<vmem>>, vector<1x128xf32>
    %13 = vector.broadcast %12 : vector<1x128xf32> to vector<2x128xf32>
    %14 = arith.addf %11, %13 : vector<2x128xf32>
    %cst_11 = arith.constant 0.000000e+00 : f32
    %15 = vector.broadcast %cst_11 : f32 to vector<2x128xf32>
    %16 = arith.maximumf %14, %15 : vector<2x128xf32>
    %17 = arith.truncf %16 : vector<2x128xf32> to vector<2x128xbf16>
    %c0_12 = arith.constant 0 : index
    %c0_13 = arith.constant 0 : index
    %18 = vector.load %arg6[%c0_12, %c0_13] : memref<128x128xbf16, #tpu.memory_space<vmem>>, vector<128x128xbf16>
    %cst_14 = arith.constant dense<0.000000e+00> : vector<2x128xf32>
    %19 = tpu.matmul %17, %18, %cst_14 {dimension_numbers = #tpu.dot_dimension_numbers<[1], [0], [0], [1], [0, 0, 1, 1], [], []>} : vector<2x128xbf16>, vector<128x128xbf16>, vector<2x128xf32> -> vector<2x128xf32>
    %c0_15 = arith.constant 0 : index
    %c0_16 = arith.constant 0 : index
    %20 = vector.load %arg7[%c0_15, %c0_16] : memref<1x128xf32, #tpu.memory_space<vmem>>, vector<1x128xf32>
    %21 = vector.broadcast %20 : vector<1x128xf32> to vector<2x128xf32>
    %22 = arith.addf %19, %21 : vector<2x128xf32>
    %c0_17 = arith.constant 0 : index
    %c0_18 = arith.constant 0 : index
    %23 = vector.load %arg8[%c0_17, %c0_18] : memref<2x128xf32, #tpu.memory_space<vmem>>, vector<2x128xf32>
    tpu.vector_store %arg8[%c0_17, %c0_18], %22 {strides = array<i32>} : memref<2x128xf32, #tpu.memory_space<vmem>>, vector<2x128xf32>,
    return
  }
  func.func @transform_0(%arg0: i32) -> (i32, i32) {
    %c0_i32 = arith.constant 0 : i32
    %c0_i32_0 = arith.constant 0 : i32
    return %arg0, %c0_i32 : i32, i32
  }
  func.func @transform_1(%arg0: i32) -> (i32, i32) {
    %c0_i32 = arith.constant 0 : i32
    %c0_i32_0 = arith.constant 0 : i32
    %c0_i32_1 = arith.constant 0 : i32
    return %c0_i32, %c0_i32_0 : i32, i32
  }
  func.func @transform_2(%arg0: i32) -> (i32, i32) {
    %c0_i32 = arith.constant 0 : i32
    %c0_i32_0 = arith.constant 0 : i32
    %c0_i32_1 = arith.constant 0 : i32
    return %c0_i32, %c0_i32_0 : i32, i32
  }
  func.func @transform_3(%arg0: i32) -> (i32, i32) {
    %c0_i32 = arith.constant 0 : i32
    %c0_i32_0 = arith.constant 0 : i32
    %c0_i32_1 = arith.constant 0 : i32
    return %c0_i32, %c0_i32_0 : i32, i32
  }
  func.func @transform_4(%arg0: i32) -> (i32, i32) {
    %c0_i32 = arith.constant 0 : i32
    %c0_i32_0 = arith.constant 0 : i32
    %c0_i32_1 = arith.constant 0 : i32
    return %c0_i32, %c0_i32_0 : i32, i32
  }
  func.func @transform_5(%arg0: i32) -> (i32, i32) {
    %c0_i32 = arith.constant 0 : i32
    %c0_i32_0 = arith.constant 0 : i32
    %c0_i32_1 = arith.constant 0 : i32
    return %c0_i32, %c0_i32_0 : i32, i32
  }
  func.func @transform_6(%arg0: i32) -> (i32, i32) {
    %c0_i32 = arith.constant 0 : i32
    %c0_i32_0 = arith.constant 0 : i32
    %c0_i32_1 = arith.constant 0 : i32
    return %c0_i32, %c0_i32_0 : i32, i32
  }
  func.func @transform_7(%arg0: i32) -> (i32, i32) {
    %c0_i32 = arith.constant 0 : i32
    %c0_i32_0 = arith.constant 0 : i32
    return %arg0, %c0_i32 : i32, i32
  }
}

</mosaic_0001>

<llo_original>
// kernel: multi_model_forward.1
$region0: #{multi_model_forward.1}
  #allocation0 [shape = 'u32[]', space=smem, size = 0x4, offset = 0x4, fixed_abs, tag = 'smem constant byte address 0x4 - core index']
  #allocation1 [shape = 'u32[144,128]{1,0:T(1,128)}', space=vmem, size = 0x12000, scoped, tag = 'internal scratch']
  %s0 = inlined_call_operand.vmem [shape: f32[2,1024], index: 0, kind: input, shape index: {}]
  %s1 = inlined_call_operand.hbm [shape: bf16[1024,128], index: 1, kind: input, shape index: {}]
  %s2 = inlined_call_operand.vmem [shape: f32[1,128], index: 2, kind: input, shape index: {}]
  %s3 = inlined_call_operand.vmem [shape: bf16[128,128], index: 3, kind: input, shape index: {}]
  %s4 = inlined_call_operand.vmem [shape: f32[1,128], index: 4, kind: input, shape index: {}]
  %s5 = inlined_call_operand.vmem [shape: bf16[128,128], index: 5, kind: input, shape index: {}]
  %s6 = inlined_call_operand.vmem [shape: f32[1,128], index: 6, kind: input, shape index: {}]
  %s7 = inlined_call_operand.vmem [shape: f32[2,128], index: 7, kind: output, shape index: {}]
  %s8 = sld [smem:[#allocation0]]
  $region42: #{multi_model_forward.1} parent=0
    _
  %s10 = ssub.s32 1, %s8
  %s11 = scalar_select 0, %s10, %s8
  $region1: #{multi_model_forward.1} parent=0
    #allocation2 [shape = 'u8[262144]{0}', space=vmem, size = 0x40000, scoped, tag = 'input window, operand 1, single buffered']
    #allocation3 [shape = 's32[1]{0}', space=sflag, size = 0x4, scoped, tag = 'scoped memory for multi_model_forward.1']
    %12 = vsyncpa [#allocation3], 0
    // Predicated region
    $region2: #{multi_model_forward.1} parent=1 // pred_check
      _
    $region3: #{multi_model_forward.1} parent=1 // pred_check_branch
      %14 = sbr.rel (0) target = $region5
    $region4: #{multi_model_forward.1} parent=1 // pred_region
      _
    $region5: #{multi_model_forward.1} parent=1 // pred_fallthru
      _
    // Predicated region
    $region6: #{multi_model_forward.1} parent=1 // pred_check
      _
    $region7: #{multi_model_forward.1} parent=1 // pred_check_branch
      %16 = sbr.rel (0) target = $region9
    $region8: #{multi_model_forward.1} parent=1 // pred_region
      %s18 = ssub.s32 8192, 8192
      %19 = vsyncadd [#allocation3], %s18
      %s20 = sshll.u32 [#allocation2], 4
      %s21 = int_to_ptr.vmem [resolvable:$true] %s20
      %26 = dma.hbm_to_vmem [thread:$0]  %s1, 8192, %s21, [#allocation3], 64, 64, 4
    $region9: #{multi_model_forward.1} parent=1 // pred_fallthru
      _
    // Predicated region
    $region10: #{multi_model_forward.1} parent=1 // pred_check
      _
    $region11: #{multi_model_forward.1} parent=1 // pred_check_branch
      %28 = sbr.rel (0) target = $region13
    $region12: #{multi_model_forward.1} parent=1 // pred_region
      _
    $region13: #{multi_model_forward.1} parent=1 // pred_fallthru
      _
    // Predicated region
    $region14: #{multi_model_forward.1} parent=1 // pred_check
      _
    $region15: #{multi_model_forward.1} parent=1 // pred_check_branch
      %30 = sbr.rel (0) target = $region17
    $region16: #{multi_model_forward.1} parent=1 // pred_region
      _
    $region17: #{multi_model_forward.1} parent=1 // pred_fallthru
      _
    // Predicated region
    $region18: #{multi_model_forward.1} parent=1 // pred_check
      _
    $region19: #{multi_model_forward.1} parent=1 // pred_check_branch
      %32 = sbr.rel (0) target = $region21
    $region20: #{multi_model_forward.1} parent=1 // pred_region
      _
    $region21: #{multi_model_forward.1} parent=1 // pred_fallthru
      _
    // Predicated region
    $region22: #{multi_model_forward.1} parent=1 // pred_check
      _
    $region23: #{multi_model_forward.1} parent=1 // pred_check_branch
      %34 = sbr.rel (0) target = $region25
    $region24: #{multi_model_forward.1} parent=1 // pred_region
      _
    $region25: #{multi_model_forward.1} parent=1 // pred_fallthru
      _
    // Predicated region
    $region26: #{multi_model_forward.1} parent=1 // pred_check
      _
    $region27: #{multi_model_forward.1} parent=1 // pred_check_branch
      %36 = sbr.rel (0) target = $region29
    $region28: #{multi_model_forward.1} parent=1 // pred_region
      _
    $region29: #{multi_model_forward.1} parent=1 // pred_fallthru
      _
    // Predicated region
    $region30: #{multi_model_forward.1} parent=1 // pred_check
      _
    $region31: #{multi_model_forward.1} parent=1 // pred_check_branch
      %38 = sbr.rel (0) target = $region33
    $region32: #{multi_model_forward.1} parent=1 // pred_region
      %39 = dma.done [#allocation3], 8192
    $region33: #{multi_model_forward.1} parent=1 // pred_fallthru
      _
    %v41 = vld [vmem:[%s0] sm:$0xff]
    %v42 = vld [vmem:[%s0 + $0x8] sm:$0xff]
    %v45 = vcombine.high %v41, %v41
    %v47 = vunpack.c.l.s4 1983009808
    %v48 = vunpack.c.0.s8 %v47
    %v49 = vlaneseq
    %v50 = vshrl.u32 %v49, 7
    %v51 = vsub.s32 %v48, %v50
    %v52 = vrot.slane %v41, %v51
    %v54 = vunpack.c.l.s4 1983009808
    %v55 = vunpack.c.0.s8 %v54
    %v56 = vlaneseq
    %v57 = vshrl.u32 %v56, 7
    %v58 = vsub.s32 %v55, %v57
    %v59 = vrot.slane %v45, %v58
    %v60 = vcombine.high %v52, %v52
    %v61 = vcombine.high %v59, %v59
    %v62 = vcombine.high %v42, %v42
    %v64 = vunpack.c.l.s4 1983009808
    %v65 = vunpack.c.0.s8 %v64
    %v66 = vlaneseq
    %v67 = vshrl.u32 %v66, 7
    %v68 = vsub.s32 %v65, %v67
    %v69 = vrot.slane %v42, %v68
    %v71 = vunpack.c.l.s4 1983009808
    %v72 = vunpack.c.0.s8 %v71
    %v73 = vlaneseq
    %v74 = vshrl.u32 %v73, 7
    %v75 = vsub.s32 %v72, %v74
    %v76 = vrot.slane %v62, %v75
    %v77 = vcombine.high %v69, %v69
    %v78 = vcombine.high %v76, %v76
    %v87 = vpack.c.bf16 %v52, %v52
    %v88 = vpack.c.bf16 %v60, %v60
    %v89 = vpack.c.bf16 %v59, %v59
    %v90 = vpack.c.bf16 %v61, %v61
    %v91 = vpack.c.bf16 %v69, %v69
    %v92 = vpack.c.bf16 %v77, %v77
    %v93 = vpack.c.bf16 %v76, %v76
    %v94 = vpack.c.bf16 %v78, %v78
    %v95 = vld [vmem:[#allocation2] sm:$0xf]
    %v96 = vld [vmem:[#allocation2 + $0x4] sm:$0xf]
    %v97 = vld [vmem:[#allocation2 + $0x8] sm:$0xf]
    %v98 = vld [vmem:[#allocation2 + $0xc] sm:$0xf]
    %v99 = vld [vmem:[#allocation2 + $0x10] sm:$0xf]
    %v100 = vld [vmem:[#allocation2 + $0x14] sm:$0xf]
    %v101 = vld [vmem:[#allocation2 + $0x18] sm:$0xf]
    %v102 = vld [vmem:[#allocation2 + $0x1c] sm:$0xf]
    %v103 = vld [vmem:[#allocation2 + $0x20] sm:$0xf]
    %v104 = vld [vmem:[#allocation2 + $0x24] sm:$0xf]
    %v105 = vld [vmem:[#allocation2 + $0x28] sm:$0xf]
    %v106 = vld [vmem:[#allocation2 + $0x2c] sm:$0xf]
    %v107 = vld [vmem:[#allocation2 + $0x30] sm:$0xf]
    %v108 = vld [vmem:[#allocation2 + $0x34] sm:$0xf]
    %v109 = vld [vmem:[#allocation2 + $0x38] sm:$0xf]
    %v110 = vld [vmem:[#allocation2 + $0x3c] sm:$0xf]
    %v111 = vld [vmem:[#allocation2 + $0x40] sm:$0xf]
    %v112 = vld [vmem:[#allocation2 + $0x44] sm:$0xf]
    %v113 = vld [vmem:[#allocation2 + $0x48] sm:$0xf]
    %v114 = vld [vmem:[#allocation2 + $0x4c] sm:$0xf]
    %v115 = vld [vmem:[#allocation2 + $0x50] sm:$0xf]
    %v116 = vld [vmem:[#allocation2 + $0x54] sm:$0xf]
    %v117 = vld [vmem:[#allocation2 + $0x58] sm:$0xf]
    %v118 = vld [vmem:[#allocation2 + $0x5c] sm:$0xf]
    %v119 = vld [vmem:[#allocation2 + $0x60] sm:$0xf]
    %v120 = vld [vmem:[#allocation2 + $0x64] sm:$0xf]
    %v121 = vld [vmem:[#allocation2 + $0x68] sm:$0xf]
    %v122 = vld [vmem:[#allocation2 + $0x6c] sm:$0xf]
    %v123 = vld [vmem:[#allocation2 + $0x70] sm:$0xf]
    %v124 = vld [vmem:[#allocation2 + $0x74] sm:$0xf]
    %v125 = vld [vmem:[#allocation2 + $0x78] sm:$0xf]
    %v126 = vld [vmem:[#allocation2 + $0x7c] sm:$0xf]
    %v127 = vld [vmem:[#allocation2 + $0x80] sm:$0xf]
    %v128 = vld [vmem:[#allocation2 + $0x84] sm:$0xf]
    %v129 = vld [vmem:[#allocation2 + $0x88] sm:$0xf]
    %v130 = vld [vmem:[#allocation2 + $0x8c] sm:$0xf]
    %v131 = vld [vmem:[#allocation2 + $0x90] sm:$0xf]
    %v132 = vld [vmem:[#allocation2 + $0x94] sm:$0xf]
    %v133 = vld [vmem:[#allocation2 + $0x98] sm:$0xf]
    %v134 = vld [vmem:[#allocation2 + $0x9c] sm:$0xf]
    %v135 = vld [vmem:[#allocation2 + $0xa0] sm:$0xf]
    %v136 = vld [vmem:[#allocation2 + $0xa4] sm:$0xf]
    %v137 = vld [vmem:[#allocation2 + $0xa8] sm:$0xf]
    %v138 = vld [vmem:[#allocation2 + $0xac] sm:$0xf]
    %v139 = vld [vmem:[#allocation2 + $0xb0] sm:$0xf]
    %v140 = vld [vmem:[#allocation2 + $0xb4] sm:$0xf]
    %v141 = vld [vmem:[#allocation2 + $0xb8] sm:$0xf]
    %v142 = vld [vmem:[#allocation2 + $0xbc] sm:$0xf]
    %v143 = vld [vmem:[#allocation2 + $0xc0] sm:$0xf]
    %v144 = vld [vmem:[#allocation2 + $0xc4] sm:$0xf]
    %v145 = vld [vmem:[#allocation2 + $0xc8] sm:$0xf]
    %v146 = vld [vmem:[#allocation2 + $0xcc] sm:$0xf]
    %v147 = vld [vmem:[#allocation2 + $0xd0] sm:$0xf]
    %v148 = vld [vmem:[#allocation2 + $0xd4] sm:$0xf]
    %v149 = vld [vmem:[#allocation2 + $0xd8] sm:$0xf]
    %v150 = vld [vmem:[#allocation2 + $0xdc] sm:$0xf]
    %v151 = vld [vmem:[#allocation2 + $0xe0] sm:$0xf]
    %v152 = vld [vmem:[#allocation2 + $0xe4] sm:$0xf]
    %v153 = vld [vmem:[#allocation2 + $0xe8] sm:$0xf]
    %v154 = vld [vmem:[#allocation2 + $0xec] sm:$0xf]
    %v155 = vld [vmem:[#allocation2 + $0xf0] sm:$0xf]
    %v156 = vld [vmem:[#allocation2 + $0xf4] sm:$0xf]
    %v157 = vld [vmem:[#allocation2 + $0xf8] sm:$0xf]
    %v158 = vld [vmem:[#allocation2 + $0xfc] sm:$0xf]
    %v159 = vld [vmem:[#allocation2 + $0x100] sm:$0xf]
    %v160 = vld [vmem:[#allocation2 + $0x104] sm:$0xf]
    %v161 = vld [vmem:[#allocation2 + $0x108] sm:$0xf]
    %v162 = vld [vmem:[#allocation2 + $0x10c] sm:$0xf]
    %v163 = vld [vmem:[#allocation2 + $0x110] sm:$0xf]
    %v164 = vld [vmem:[#allocation2 + $0x114] sm:$0xf]
    %v165 = vld [vmem:[#allocation2 + $0x118] sm:$0xf]
    %v166 = vld [vmem:[#allocation2 + $0x11c] sm:$0xf]
    %v167 = vld [vmem:[#allocation2 + $0x120] sm:$0xf]
    %v168 = vld [vmem:[#allocation2 + $0x124] sm:$0xf]
    %v169 = vld [vmem:[#allocation2 + $0x128] sm:$0xf]
    %v170 = vld [vmem:[#allocation2 + $0x12c] sm:$0xf]
    %v171 = vld [vmem:[#allocation2 + $0x130] sm:$0xf]
    %v172 = vld [vmem:[#allocation2 + $0x134] sm:$0xf]
    %v173 = vld [vmem:[#allocation2 + $0x138] sm:$0xf]
    %v174 = vld [vmem:[#allocation2 + $0x13c] sm:$0xf]
    %v175 = vld [vmem:[#allocation2 + $0x140] sm:$0xf]
    %v176 = vld [vmem:[#allocation2 + $0x144] sm:$0xf]
    %v177 = vld [vmem:[#allocation2 + $0x148] sm:$0xf]
    %v178 = vld [vmem:[#allocation2 + $0x14c] sm:$0xf]
    %v179 = vld [vmem:[#allocation2 + $0x150] sm:$0xf]
    %v180 = vld [vmem:[#allocation2 + $0x154] sm:$0xf]
    %v181 = vld [vmem:[#allocation2 + $0x158] sm:$0xf]
    %v182 = vld [vmem:[#allocation2 + $0x15c] sm:$0xf]
    %v183 = vld [vmem:[#allocation2 + $0x160] sm:$0xf]
    %v184 = vld [vmem:[#allocation2 + $0x164] sm:$0xf]
    %v185 = vld [vmem:[#allocation2 + $0x168] sm:$0xf]
    %v186 = vld [vmem:[#allocation2 + $0x16c] sm:$0xf]
    %v187 = vld [vmem:[#allocation2 + $0x170] sm:$0xf]
    %v188 = vld [vmem:[#allocation2 + $0x174] sm:$0xf]
    %v189 = vld [vmem:[#allocation2 + $0x178] sm:$0xf]
    %v190 = vld [vmem:[#allocation2 + $0x17c] sm:$0xf]
    %v191 = vld [vmem:[#allocation2 + $0x180] sm:$0xf]
    %v192 = vld [vmem:[#allocation2 + $0x184] sm:$0xf]
    %v193 = vld [vmem:[#allocation2 + $0x188] sm:$0xf]
    %v194 = vld [vmem:[#allocation2 + $0x18c] sm:$0xf]
    %v195 = vld [vmem:[#allocation2 + $0x190] sm:$0xf]
    %v196 = vld [vmem:[#allocation2 + $0x194] sm:$0xf]
    %v197 = vld [vmem:[#allocation2 + $0x198] sm:$0xf]
    %v198 = vld [vmem:[#allocation2 + $0x19c] sm:$0xf]
    %v199 = vld [vmem:[#allocation2 + $0x1a0] sm:$0xf]
    %v200 = vld [vmem:[#allocation2 + $0x1a4] sm:$0xf]
    %v201 = vld [vmem:[#allocation2 + $0x1a8] sm:$0xf]
    %v202 = vld [vmem:[#allocation2 + $0x1ac] sm:$0xf]
    %v203 = vld [vmem:[#allocation2 + $0x1b0] sm:$0xf]
    %v204 = vld [vmem:[#allocation2 + $0x1b4] sm:$0xf]
    %v205 = vld [vmem:[#allocation2 + $0x1b8] sm:$0xf]
    %v206 = vld [vmem:[#allocation2 + $0x1bc] sm:$0xf]
    %v207 = vld [vmem:[#allocation2 + $0x1c0] sm:$0xf]
    %v208 = vld [vmem:[#allocation2 + $0x1c4] sm:$0xf]
    %v209 = vld [vmem:[#allocation2 + $0x1c8] sm:$0xf]
    %v210 = vld [vmem:[#allocation2 + $0x1cc] sm:$0xf]
    %v211 = vld [vmem:[#allocation2 + $0x1d0] sm:$0xf]
    %v212 = vld [vmem:[#allocation2 + $0x1d4] sm:$0xf]
    %v213 = vld [vmem:[#allocation2 + $0x1d8] sm:$0xf]
    %v214 = vld [vmem:[#allocation2 + $0x1dc] sm:$0xf]
    %v215 = vld [vmem:[#allocation2 + $0x1e0] sm:$0xf]
    %v216 = vld [vmem:[#allocation2 + $0x1e4] sm:$0xf]
    %v217 = vld [vmem:[#allocation2 + $0x1e8] sm:$0xf]
    %v218 = vld [vmem:[#allocation2 + $0x1ec] sm:$0xf]
    %v219 = vld [vmem:[#allocation2 + $0x1f0] sm:$0xf]
    %v220 = vld [vmem:[#allocation2 + $0x1f4] sm:$0xf]
    %v221 = vld [vmem:[#allocation2 + $0x1f8] sm:$0xf]
    %v222 = vld [vmem:[#allocation2 + $0x1fc] sm:$0xf]
    %v223 = vld [vmem:[%s2] sm:$0x1]
    %v225 = vlaneseq
    %v226 = vshrl.u32 %v225, 7
    %v227 = vsub.s32 0, %v226
    %v228 = vrot.slane %v223, %v227
    %v358 = vunpack.c.l.b16 %v95
    %v359 = vunpack.c.l.b16 %v96
    %v360 = vunpack.c.l.b16 %v97
    %v361 = vunpack.c.l.b16 %v98
    %v362 = vunpack.c.l.b16 %v99
    %v363 = vunpack.c.l.b16 %v100
    %v364 = vunpack.c.l.b16 %v101
    %v365 = vunpack.c.l.b16 %v102
    %v366 = vunpack.c.l.b16 %v103
    %v367 = vunpack.c.l.b16 %v104
    %v368 = vunpack.c.l.b16 %v105
    %v369 = vunpack.c.l.b16 %v106
    %v370 = vunpack.c.l.b16 %v107
    %v371 = vunpack.c.l.b16 %v108
    %v372 = vunpack.c.l.b16 %v109
    %v373 = vunpack.c.l.b16 %v110
    %v374 = vunpack.c.l.b16 %v111
    %v375 = vunpack.c.l.b16 %v112
    %v376 = vunpack.c.l.b16 %v113
    %v377 = vunpack.c.l.b16 %v114
    %v378 = vunpack.c.l.b16 %v115
    %v379 = vunpack.c.l.b16 %v116
    %v380 = vunpack.c.l.b16 %v117
    %v381 = vunpack.c.l.b16 %v118
    %v382 = vunpack.c.l.b16 %v119
    %v383 = vunpack.c.l.b16 %v120
    %v384 = vunpack.c.l.b16 %v121
    %v385 = vunpack.c.l.b16 %v122
    %v386 = vunpack.c.l.b16 %v123
    %v387 = vunpack.c.l.b16 %v124
    %v388 = vunpack.c.l.b16 %v125
    %v389 = vunpack.c.l.b16 %v126
    %v390 = vunpack.c.l.b16 %v127
    %v391 = vunpack.c.l.b16 %v128
    %v392 = vunpack.c.l.b16 %v129
    %v393 = vunpack.c.l.b16 %v130
    %v394 = vunpack.c.l.b16 %v131
    %v395 = vunpack.c.l.b16 %v132
    %v396 = vunpack.c.l.b16 %v133
    %v397 = vunpack.c.l.b16 %v134
    %v398 = vunpack.c.l.b16 %v135
    %v399 = vunpack.c.l.b16 %v136
    %v400 = vunpack.c.l.b16 %v137
    %v401 = vunpack.c.l.b16 %v138
    %v402 = vunpack.c.l.b16 %v139
    %v403 = vunpack.c.l.b16 %v140
    %v404 = vunpack.c.l.b16 %v141
    %v405 = vunpack.c.l.b16 %v142
    %v406 = vunpack.c.l.b16 %v143
    %v407 = vunpack.c.l.b16 %v144
    %v408 = vunpack.c.l.b16 %v145
    %v409 = vunpack.c.l.b16 %v146
    %v410 = vunpack.c.l.b16 %v147
    %v411 = vunpack.c.l.b16 %v148
    %v412 = vunpack.c.l.b16 %v149
    %v413 = vunpack.c.l.b16 %v150
    %v414 = vunpack.c.l.b16 %v151
    %v415 = vunpack.c.l.b16 %v152
    %v416 = vunpack.c.l.b16 %v153
    %v417 = vunpack.c.l.b16 %v154
    %v418 = vunpack.c.l.b16 %v155
    %v419 = vunpack.c.l.b16 %v156
    %v420 = vunpack.c.l.b16 %v157
    %v421 = vunpack.c.l.b16 %v158
    %v422 = vunpack.c.l.b16 %v159
    %v423 = vunpack.c.l.b16 %v160
    %v424 = vunpack.c.l.b16 %v161
    %v425 = vunpack.c.l.b16 %v162
    %v426 = vunpack.c.l.b16 %v163
    %v427 = vunpack.c.l.b16 %v164
    %v428 = vunpack.c.l.b16 %v165
    %v429 = vunpack.c.l.b16 %v166
    %v430 = vunpack.c.l.b16 %v167
    %v431 = vunpack.c.l.b16 %v168
    %v432 = vunpack.c.l.b16 %v169
    %v433 = vunpack.c.l.b16 %v170
    %v434 = vunpack.c.l.b16 %v171
    %v435 = vunpack.c.l.b16 %v172
    %v436 = vunpack.c.l.b16 %v173
    %v437 = vunpack.c.l.b16 %v174
    %v438 = vunpack.c.l.b16 %v175
    %v439 = vunpack.c.l.b16 %v176
    %v440 = vunpack.c.l.b16 %v177
    %v441 = vunpack.c.l.b16 %v178
    %v442 = vunpack.c.l.b16 %v179
    %v443 = vunpack.c.l.b16 %v180
    %v444 = vunpack.c.l.b16 %v181
    %v445 = vunpack.c.l.b16 %v182
    %v446 = vunpack.c.l.b16 %v183
    %v447 = vunpack.c.l.b16 %v184
    %v448 = vunpack.c.l.b16 %v185
    %v449 = vunpack.c.l.b16 %v186
    %v450 = vunpack.c.l.b16 %v187
    %v451 = vunpack.c.l.b16 %v188
    %v452 = vunpack.c.l.b16 %v189
    %v453 = vunpack.c.l.b16 %v190
    %v454 = vunpack.c.l.b16 %v191
    %v455 = vunpack.c.l.b16 %v192
    %v456 = vunpack.c.l.b16 %v193
    %v457 = vunpack.c.l.b16 %v194
    %v458 = vunpack.c.l.b16 %v195
    %v459 = vunpack.c.l.b16 %v196
    %v460 = vunpack.c.l.b16 %v197
    %v461 = vunpack.c.l.b16 %v198
    %v462 = vunpack.c.l.b16 %v199
    %v463 = vunpack.c.l.b16 %v200
    %v464 = vunpack.c.l.b16 %v201
    %v465 = vunpack.c.l.b16 %v202
    %v466 = vunpack.c.l.b16 %v203
    %v467 = vunpack.c.l.b16 %v204
    %v468 = vunpack.c.l.b16 %v205
    %v469 = vunpack.c.l.b16 %v206
    %v470 = vunpack.c.l.b16 %v207
    %v471 = vunpack.c.l.b16 %v208
    %v472 = vunpack.c.l.b16 %v209
    %v473 = vunpack.c.l.b16 %v210
    %v474 = vunpack.c.l.b16 %v211
    %v475 = vunpack.c.l.b16 %v212
    %v476 = vunpack.c.l.b16 %v213
    %v477 = vunpack.c.l.b16 %v214
    %v478 = vunpack.c.l.b16 %v215
    %v479 = vunpack.c.l.b16 %v216
    %v480 = vunpack.c.l.b16 %v217
    %v481 = vunpack.c.l.b16 %v218
    %v482 = vunpack.c.l.b16 %v219
    %v483 = vunpack.c.l.b16 %v220
    %v484 = vunpack.c.l.b16 %v221
    %v485 = vunpack.c.l.b16 %v222
    %v486 = vpack.c.b16 %v359, %v358
    %v487 = vpack.c.b16 %v361, %v360
    %v488 = vpack.c.b16 %v363, %v362
    %v489 = vpack.c.b16 %v365, %v364
    %v490 = vpack.c.b16 %v367, %v366
    %v491 = vpack.c.b16 %v369, %v368
    %v492 = vpack.c.b16 %v371, %v370
    %v493 = vpack.c.b16 %v373, %v372
    %v494 = vpack.c.b16 %v375, %v374
    %v495 = vpack.c.b16 %v377, %v376
    %v496 = vpack.c.b16 %v379, %v378
    %v497 = vpack.c.b16 %v381, %v380
    %v498 = vpack.c.b16 %v383, %v382
    %v499 = vpack.c.b16 %v385, %v384
    %v500 = vpack.c.b16 %v387, %v386
    %v501 = vpack.c.b16 %v389, %v388
    %v502 = vpack.c.b16 %v391, %v390
    %v503 = vpack.c.b16 %v393, %v392
    %v504 = vpack.c.b16 %v395, %v394
    %v505 = vpack.c.b16 %v397, %v396
    %v506 = vpack.c.b16 %v399, %v398
    %v507 = vpack.c.b16 %v401, %v400
    %v508 = vpack.c.b16 %v403, %v402
    %v509 = vpack.c.b16 %v405, %v404
    %v510 = vpack.c.b16 %v407, %v406
    %v511 = vpack.c.b16 %v409, %v408
    %v512 = vpack.c.b16 %v411, %v410
    %v513 = vpack.c.b16 %v413, %v412
    %v514 = vpack.c.b16 %v415, %v414
    %v515 = vpack.c.b16 %v417, %v416
    %v516 = vpack.c.b16 %v419, %v418
    %v517 = vpack.c.b16 %v421, %v420
    %v518 = vpack.c.b16 %v423, %v422
    %v519 = vpack.c.b16 %v425, %v424
    %v520 = vpack.c.b16 %v427, %v426
    %v521 = vpack.c.b16 %v429, %v428
    %v522 = vpack.c.b16 %v431, %v430
    %v523 = vpack.c.b16 %v433, %v432
    %v524 = vpack.c.b16 %v435, %v434
    %v525 = vpack.c.b16 %v437, %v436
    %v526 = vpack.c.b16 %v439, %v438
    %v527 = vpack.c.b16 %v441, %v440
    %v528 = vpack.c.b16 %v443, %v442
    %v529 = vpack.c.b16 %v445, %v444
    %v530 = vpack.c.b16 %v447, %v446
    %v531 = vpack.c.b16 %v449, %v448
    %v532 = vpack.c.b16 %v451, %v450
    %v533 = vpack.c.b16 %v453, %v452
    %v534 = vpack.c.b16 %v455, %v454
    %v535 = vpack.c.b16 %v457, %v456
    %v536 = vpack.c.b16 %v459, %v458
    %v537 = vpack.c.b16 %v461, %v460
    %v538 = vpack.c.b16 %v463, %v462
    %v539 = vpack.c.b16 %v465, %v464
    %v540 = vpack.c.b16 %v467, %v466
    %v541 = vpack.c.b16 %v469, %v468
    %v542 = vpack.c.b16 %v471, %v470
    %v543 = vpack.c.b16 %v473, %v472
    %v544 = vpack.c.b16 %v475, %v474
    %v545 = vpack.c.b16 %v477, %v476
    %v546 = vpack.c.b16 %v479, %v478
    %v547 = vpack.c.b16 %v481, %v480
    %v548 = vpack.c.b16 %v483, %v482
    %v549 = vpack.c.b16 %v485, %v484
    %614 = vmatprep.subr.bf16.mxu0 0
    %615 = vmatpush1.bf16.msra.mxu0 %v486
    %616 = vmatprep.subr.bf16.mxu0 0
    %617 = vmatpush1.bf16.msra.mxu0 %v487
    %618 = vmatprep.subr.bf16.mxu0 0
    %619 = vmatpush1.bf16.msra.mxu0 %v488
    %620 = vmatprep.subr.bf16.mxu0 0
    %621 = vmatpush1.bf16.msra.mxu0 %v489
    %622 = vmatprep.subr.bf16.mxu0 0
    %623 = vmatpush1.bf16.msra.mxu0 %v490
    %624 = vmatprep.subr.bf16.mxu0 0
    %625 = vmatpush1.bf16.msra.mxu0 %v491
    %626 = vmatprep.subr.bf16.mxu0 0
    %627 = vmatpush1.bf16.msra.mxu0 %v492
    %628 = vmatprep.subr.bf16.mxu0 0
    %629 = vmatpush1.bf16.msra.mxu0 %v493
    %630 = vmatprep.subr.bf16.mxu0 0
    %631 = vmatpush1.bf16.msra.mxu0 %v494
    %632 = vmatprep.subr.bf16.mxu0 0
    %633 = vmatpush1.bf16.msra.mxu0 %v495
    %634 = vmatprep.subr.bf16.mxu0 0
    %635 = vmatpush1.bf16.msra.mxu0 %v496
    %636 = vmatprep.subr.bf16.mxu0 0
    %637 = vmatpush1.bf16.msra.mxu0 %v497
    %638 = vmatprep.subr.bf16.mxu0 0
    %639 = vmatpush1.bf16.msra.mxu0 %v498
    %640 = vmatprep.subr.bf16.mxu0 0
    %641 = vmatpush1.bf16.msra.mxu0 %v499
    %642 = vmatprep.subr.bf16.mxu0 0
    %643 = vmatpush1.bf16.msra.mxu0 %v500
    %644 = vmatprep.subr.bf16.mxu0 0
    %645 = vmatpush1.bf16.msra.mxu0 %v501
    %646 = vmatprep.mubr.bf16.mxu0 %v88
    %647 = vmatmul.mubr.bf16.gmra.mrb[0].mxu0 %v87
    %v648 = vpop.f32.mrb[0].mxu0
    %v649 = vadd.f32 %v228, %v648
    %v650 = vpop.f32.mrb[0].mxu0
    %v651 = vpop.f32.mrb[0].mxu0
    %v652 = vpop.f32.mrb[0].mxu0
    %653 = vdwg.mxu0
    %654 = vmatprep.subr.bf16.mxu0 0
    %655 = vmatpush1.bf16.msra.mxu0 %v502
    %656 = vmatprep.subr.bf16.mxu0 0
    %657 = vmatpush1.bf16.msra.mxu0 %v503
    %658 = vmatprep.subr.bf16.mxu0 0
    %659 = vmatpush1.bf16.msra.mxu0 %v504
    %660 = vmatprep.subr.bf16.mxu0 0
    %661 = vmatpush1.bf16.msra.mxu0 %v505
    %662 = vmatprep.subr.bf16.mxu0 0
    %663 = vmatpush1.bf16.msra.mxu0 %v506
    %664 = vmatprep.subr.bf16.mxu0 0
    %665 = vmatpush1.bf16.msra.mxu0 %v507
    %666 = vmatprep.subr.bf16.mxu0 0
    %667 = vmatpush1.bf16.msra.mxu0 %v508
    %668 = vmatprep.subr.bf16.mxu0 0
    %669 = vmatpush1.bf16.msra.mxu0 %v509
    %670 = vmatprep.subr.bf16.mxu0 0
    %671 = vmatpush1.bf16.msra.mxu0 %v510
    %672 = vmatprep.subr.bf16.mxu0 0
    %673 = vmatpush1.bf16.msra.mxu0 %v511
    %674 = vmatprep.subr.bf16.mxu0 0
    %675 = vmatpush1.bf16.msra.mxu0 %v512
    %676 = vmatprep.subr.bf16.mxu0 0
    %677 = vmatpush1.bf16.msra.mxu0 %v513
    %678 = vmatprep.subr.bf16.mxu0 0
    %679 = vmatpush1.bf16.msra.mxu0 %v514
    %680 = vmatprep.subr.bf16.mxu0 0
    %681 = vmatpush1.bf16.msra.mxu0 %v515
    %682 = vmatprep.subr.bf16.mxu0 0
    %683 = vmatpush1.bf16.msra.mxu0 %v516
    %684 = vmatprep.subr.bf16.mxu0 0
    %685 = vmatpush1.bf16.msra.mxu0 %v517
    %686 = vmatprep.mubr.bf16.mxu0 %v90
    %687 = vmatmul.mubr.bf16.gmra.mrb[0].mxu0 %v89
    %v688 = vpop.f32.mrb[0].mxu0
    %v689 = vadd.f32 %v649, %v688
    %v690 = vpop.f32.mrb[0].mxu0
    %v691 = vpop.f32.mrb[0].mxu0
    %v692 = vpop.f32.mrb[0].mxu0
    %693 = vdwg.mxu0
    %694 = vmatprep.subr.bf16.mxu0 0
    %695 = vmatpush1.bf16.msra.mxu0 %v518
    %696 = vmatprep.subr.bf16.mxu0 0
    %697 = vmatpush1.bf16.msra.mxu0 %v519
    %698 = vmatprep.subr.bf16.mxu0 0
    %699 = vmatpush1.bf16.msra.mxu0 %v520
    %700 = vmatprep.subr.bf16.mxu0 0
    %701 = vmatpush1.bf16.msra.mxu0 %v521
    %702 = vmatprep.subr.bf16.mxu0 0
    %703 = vmatpush1.bf16.msra.mxu0 %v522
    %704 = vmatprep.subr.bf16.mxu0 0
    %705 = vmatpush1.bf16.msra.mxu0 %v523
    %706 = vmatprep.subr.bf16.mxu0 0
    %707 = vmatpush1.bf16.msra.mxu0 %v524
    %708 = vmatprep.subr.bf16.mxu0 0
    %709 = vmatpush1.bf16.msra.mxu0 %v525
    %710 = vmatprep.subr.bf16.mxu0 0
    %711 = vmatpush1.bf16.msra.mxu0 %v526
    %712 = vmatprep.subr.bf16.mxu0 0
    %713 = vmatpush1.bf16.msra.mxu0 %v527
    %714 = vmatprep.subr.bf16.mxu0 0
    %715 = vmatpush1.bf16.msra.mxu0 %v528
    %716 = vmatprep.subr.bf16.mxu0 0
    %717 = vmatpush1.bf16.msra.mxu0 %v529
    %718 = vmatprep.subr.bf16.mxu0 0
    %719 = vmatpush1.bf16.msra.mxu0 %v530
    %720 = vmatprep.subr.bf16.mxu0 0
    %721 = vmatpush1.bf16.msra.mxu0 %v531
    %722 = vmatprep.subr.bf16.mxu0 0
    %723 = vmatpush1.bf16.msra.mxu0 %v532
    %724 = vmatprep.subr.bf16.mxu0 0
    %725 = vmatpush1.bf16.msra.mxu0 %v533
    %726 = vmatprep.mubr.bf16.mxu0 %v92
    %727 = vmatmul.mubr.bf16.gmra.mrb[0].mxu0 %v91
    %v728 = vpop.f32.mrb[0].mxu0
    %v729 = vadd.f32 %v689, %v728
    %v730 = vpop.f32.mrb[0].mxu0
    %v731 = vpop.f32.mrb[0].mxu0
    %v732 = vpop.f32.mrb[0].mxu0
    %733 = vdwg.mxu0
    %734 = vmatprep.subr.bf16.mxu0 0
    %735 = vmatpush1.bf16.msra.mxu0 %v534
    %736 = vmatprep.subr.bf16.mxu0 0
    %737 = vmatpush1.bf16.msra.mxu0 %v535
    %738 = vmatprep.subr.bf16.mxu0 0
    %739 = vmatpush1.bf16.msra.mxu0 %v536
    %740 = vmatprep.subr.bf16.mxu0 0
    %741 = vmatpush1.bf16.msra.mxu0 %v537
    %742 = vmatprep.subr.bf16.mxu0 0
    %743 = vmatpush1.bf16.msra.mxu0 %v538
    %744 = vmatprep.subr.bf16.mxu0 0
    %745 = vmatpush1.bf16.msra.mxu0 %v539
    %746 = vmatprep.subr.bf16.mxu0 0
    %747 = vmatpush1.bf16.msra.mxu0 %v540
    %748 = vmatprep.subr.bf16.mxu0 0
    %749 = vmatpush1.bf16.msra.mxu0 %v541
    %750 = vmatprep.subr.bf16.mxu0 0
    %751 = vmatpush1.bf16.msra.mxu0 %v542
    %752 = vmatprep.subr.bf16.mxu0 0
    %753 = vmatpush1.bf16.msra.mxu0 %v543
    %754 = vmatprep.subr.bf16.mxu0 0
    %755 = vmatpush1.bf16.msra.mxu0 %v544
    %756 = vmatprep.subr.bf16.mxu0 0
    %757 = vmatpush1.bf16.msra.mxu0 %v545
    %758 = vmatprep.subr.bf16.mxu0 0
    %759 = vmatpush1.bf16.msra.mxu0 %v546
    %760 = vmatprep.subr.bf16.mxu0 0
    %761 = vmatpush1.bf16.msra.mxu0 %v547
    %762 = vmatprep.subr.bf16.mxu0 0
    %763 = vmatpush1.bf16.msra.mxu0 %v548
    %764 = vmatprep.subr.bf16.mxu0 0
    %765 = vmatpush1.bf16.msra.mxu0 %v549
    %766 = vmatprep.mubr.bf16.mxu0 %v94
    %767 = vmatmul.mubr.bf16.gmra.mrb[0].mxu0 %v93
    %v768 = vpop.f32.mrb[0].mxu0
    %v769 = vadd.f32 %v729, %v768
    %v770 = vpop.f32.mrb[0].mxu0
    %v771 = vpop.f32.mrb[0].mxu0
    %v772 = vpop.f32.mrb[0].mxu0
    %773 = vdwg.mxu0
    %v774 = vmax.f32 %v769, 0.0
    %v775 = vpack.c.bf16 %v774, %v774
    %v776 = vld [vmem:[%s3] sm:$0xf]
    %v777 = vld [vmem:[%s3 + $0x4] sm:$0xf]
    %v778 = vld [vmem:[%s3 + $0x8] sm:$0xf]
    %v779 = vld [vmem:[%s3 + $0xc] sm:$0xf]
    %v780 = vld [vmem:[%s3 + $0x10] sm:$0xf]
    %v781 = vld [vmem:[%s3 + $0x14] sm:$0xf]
    %v782 = vld [vmem:[%s3 + $0x18] sm:$0xf]
    %v783 = vld [vmem:[%s3 + $0x1c] sm:$0xf]
    %v784 = vld [vmem:[%s3 + $0x20] sm:$0xf]
    %v785 = vld [vmem:[%s3 + $0x24] sm:$0xf]
    %v786 = vld [vmem:[%s3 + $0x28] sm:$0xf]
    %v787 = vld [vmem:[%s3 + $0x2c] sm:$0xf]
    %v788 = vld [vmem:[%s3 + $0x30] sm:$0xf]
    %v789 = vld [vmem:[%s3 + $0x34] sm:$0xf]
    %v790 = vld [vmem:[%s3 + $0x38] sm:$0xf]
    %v791 = vld [vmem:[%s3 + $0x3c] sm:$0xf]
    %v792 = vld [vmem:[%s4] sm:$0x1]
    %v794 = vlaneseq
    %v795 = vshrl.u32 %v794, 7
    %v796 = vsub.s32 0, %v795
    %v797 = vrot.slane %v792, %v796
    %v815 = vunpack.c.l.b16 %v776
    %v816 = vunpack.c.l.b16 %v777
    %v817 = vunpack.c.l.b16 %v778
    %v818 = vunpack.c.l.b16 %v779
    %v819 = vunpack.c.l.b16 %v780
    %v820 = vunpack.c.l.b16 %v781
    %v821 = vunpack.c.l.b16 %v782
    %v822 = vunpack.c.l.b16 %v783
    %v823 = vunpack.c.l.b16 %v784
    %v824 = vunpack.c.l.b16 %v785
    %v825 = vunpack.c.l.b16 %v786
    %v826 = vunpack.c.l.b16 %v787
    %v827 = vunpack.c.l.b16 %v788
    %v828 = vunpack.c.l.b16 %v789
    %v829 = vunpack.c.l.b16 %v790
    %v830 = vunpack.c.l.b16 %v791
    %v831 = vpack.c.b16 %v816, %v815
    %v832 = vpack.c.b16 %v818, %v817
    %v833 = vpack.c.b16 %v820, %v819
    %v834 = vpack.c.b16 %v822, %v821
    %v835 = vpack.c.b16 %v824, %v823
    %v836 = vpack.c.b16 %v826, %v825
    %v837 = vpack.c.b16 %v828, %v827
    %v838 = vpack.c.b16 %v830, %v829
    %847 = vmatprep.subr.bf16.mxu0 0
    %848 = vmatpush1.bf16.msra.mxu0 %v831
    %849 = vmatprep.subr.bf16.mxu0 0
    %850 = vmatpush1.bf16.msra.mxu0 %v832
    %851 = vmatprep.subr.bf16.mxu0 0
    %852 = vmatpush1.bf16.msra.mxu0 %v833
    %853 = vmatprep.subr.bf16.mxu0 0
    %854 = vmatpush1.bf16.msra.mxu0 %v834
    %855 = vmatprep.subr.bf16.mxu0 0
    %856 = vmatpush1.bf16.msra.mxu0 %v835
    %857 = vmatprep.subr.bf16.mxu0 0
    %858 = vmatpush1.bf16.msra.mxu0 %v836
    %859 = vmatprep.subr.bf16.mxu0 0
    %860 = vmatpush1.bf16.msra.mxu0 %v837
    %861 = vmatprep.subr.bf16.mxu0 0
    %862 = vmatpush1.bf16.msra.mxu0 %v838
    %863 = vmatprep.subr.bf16.mxu0 0
    %864 = vmatpush1.bf16.msra.mxu0 0
    %865 = vmatprep.subr.bf16.mxu0 0
    %866 = vmatpush1.bf16.msra.mxu0 0
    %867 = vmatprep.subr.bf16.mxu0 0
    %868 = vmatpush1.bf16.msra.mxu0 0
    %869 = vmatprep.subr.bf16.mxu0 0
    %870 = vmatpush1.bf16.msra.mxu0 0
    %871 = vmatprep.subr.bf16.mxu0 0
    %872 = vmatpush1.bf16.msra.mxu0 0
    %873 = vmatprep.subr.bf16.mxu0 0
    %874 = vmatpush1.bf16.msra.mxu0 0
    %875 = vmatprep.subr.bf16.mxu0 0
    %876 = vmatpush1.bf16.msra.mxu0 0
    %877 = vmatprep.subr.bf16.mxu0 0
    %878 = vmatpush1.bf16.msra.mxu0 0
    %879 = vmatprep.mubr.bf16.mxu0 0
    %880 = vmatmul.mubr.bf16.gmra.mrb[0].mxu0 %v775
    %v881 = vpop.f32.mrb[0].mxu0
    %v882 = vadd.f32 %v797, %v881
    %v883 = vpop.f32.mrb[0].mxu0
    %v884 = vpop.f32.mrb[0].mxu0
    %v885 = vpop.f32.mrb[0].mxu0
    %886 = vdwg.mxu0
    %v887 = vmax.f32 %v882, 0.0
    %v888 = vpack.c.bf16 %v887, %v887
    %v889 = vld [vmem:[%s5] sm:$0xf]
    %v890 = vld [vmem:[%s5 + $0x4] sm:$0xf]
    %v891 = vld [vmem:[%s5 + $0x8] sm:$0xf]
    %v892 = vld [vmem:[%s5 + $0xc] sm:$0xf]
    %v893 = vld [vmem:[%s5 + $0x10] sm:$0xf]
    %v894 = vld [vmem:[%s5 + $0x14] sm:$0xf]
    %v895 = vld [vmem:[%s5 + $0x18] sm:$0xf]
    %v896 = vld [vmem:[%s5 + $0x1c] sm:$0xf]
    %v897 = vld [vmem:[%s5 + $0x20] sm:$0xf]
    %v898 = vld [vmem:[%s5 + $0x24] sm:$0xf]
    %v899 = vld [vmem:[%s5 + $0x28] sm:$0xf]
    %v900 = vld [vmem:[%s5 + $0x2c] sm:$0xf]
    %v901 = vld [vmem:[%s5 + $0x30] sm:$0xf]
    %v902 = vld [vmem:[%s5 + $0x34] sm:$0xf]
    %v903 = vld [vmem:[%s5 + $0x38] sm:$0xf]
    %v904 = vld [vmem:[%s5 + $0x3c] sm:$0xf]
    %v905 = vld [vmem:[%s6] sm:$0x1]
    %v907 = vlaneseq
    %v908 = vshrl.u32 %v907, 7
    %v909 = vsub.s32 0, %v908
    %v910 = vrot.slane %v905, %v909
    %v928 = vunpack.c.l.b16 %v889
    %v929 = vunpack.c.l.b16 %v890
    %v930 = vunpack.c.l.b16 %v891
    %v931 = vunpack.c.l.b16 %v892
    %v932 = vunpack.c.l.b16 %v893
    %v933 = vunpack.c.l.b16 %v894
    %v934 = vunpack.c.l.b16 %v895
    %v935 = vunpack.c.l.b16 %v896
    %v936 = vunpack.c.l.b16 %v897
    %v937 = vunpack.c.l.b16 %v898
    %v938 = vunpack.c.l.b16 %v899
    %v939 = vunpack.c.l.b16 %v900
    %v940 = vunpack.c.l.b16 %v901
    %v941 = vunpack.c.l.b16 %v902
    %v942 = vunpack.c.l.b16 %v903
    %v943 = vunpack.c.l.b16 %v904
    %v944 = vpack.c.b16 %v929, %v928
    %v945 = vpack.c.b16 %v931, %v930
    %v946 = vpack.c.b16 %v933, %v932
    %v947 = vpack.c.b16 %v935, %v934
    %v948 = vpack.c.b16 %v937, %v936
    %v949 = vpack.c.b16 %v939, %v938
    %v950 = vpack.c.b16 %v941, %v940
    %v951 = vpack.c.b16 %v943, %v942
    %960 = vmatprep.subr.bf16.mxu0 0
    %961 = vmatpush1.bf16.msra.mxu0 %v944
    %962 = vmatprep.subr.bf16.mxu0 0
    %963 = vmatpush1.bf16.msra.mxu0 %v945
    %964 = vmatprep.subr.bf16.mxu0 0
    %965 = vmatpush1.bf16.msra.mxu0 %v946
    %966 = vmatprep.subr.bf16.mxu0 0
    %967 = vmatpush1.bf16.msra.mxu0 %v947
    %968 = vmatprep.subr.bf16.mxu0 0
    %969 = vmatpush1.bf16.msra.mxu0 %v948
    %970 = vmatprep.subr.bf16.mxu0 0
    %971 = vmatpush1.bf16.msra.mxu0 %v949
    %972 = vmatprep.subr.bf16.mxu0 0
    %973 = vmatpush1.bf16.msra.mxu0 %v950
    %974 = vmatprep.subr.bf16.mxu0 0
    %975 = vmatpush1.bf16.msra.mxu0 %v951
    %976 = vmatprep.subr.bf16.mxu0 0
    %977 = vmatpush1.bf16.msra.mxu0 0
    %978 = vmatprep.subr.bf16.mxu0 0
    %979 = vmatpush1.bf16.msra.mxu0 0
    %980 = vmatprep.subr.bf16.mxu0 0
    %981 = vmatpush1.bf16.msra.mxu0 0
    %982 = vmatprep.subr.bf16.mxu0 0
    %983 = vmatpush1.bf16.msra.mxu0 0
    %984 = vmatprep.subr.bf16.mxu0 0
    %985 = vmatpush1.bf16.msra.mxu0 0
    %986 = vmatprep.subr.bf16.mxu0 0
    %987 = vmatpush1.bf16.msra.mxu0 0
    %988 = vmatprep.subr.bf16.mxu0 0
    %989 = vmatpush1.bf16.msra.mxu0 0
    %990 = vmatprep.subr.bf16.mxu0 0
    %991 = vmatpush1.bf16.msra.mxu0 0
    %992 = vmatprep.mubr.bf16.mxu0 0
    %993 = vmatmul.mubr.bf16.gmra.mrb[0].mxu0 %v888
    %v994 = vpop.f32.mrb[0].mxu0
    %v995 = vadd.f32 %v910, %v994
    %v996 = vpop.f32.mrb[0].mxu0
    %v997 = vpop.f32.mrb[0].mxu0
    %v998 = vpop.f32.mrb[0].mxu0
    %999 = vdwg.mxu0
    %1000 = vst [vmem:[%s7] sm:$0x3] %v995
    // Predicated region
    $region34: #{multi_model_forward.1} parent=1 // pred_check
      _
    $region35: #{multi_model_forward.1} parent=1 // pred_check_branch
      %1002 = sbr.rel (0) target = $region37
    $region36: #{multi_model_forward.1} parent=1 // pred_region
      _
    $region37: #{multi_model_forward.1} parent=1 // pred_fallthru
      _
    // Predicated region
    $region38: #{multi_model_forward.1} parent=1 // pred_check
      _
    $region39: #{multi_model_forward.1} parent=1 // pred_check_branch
      %1004 = sbr.rel (0) target = $region41
    $region40: #{multi_model_forward.1} parent=1 // pred_region
      _
    $region41: #{multi_model_forward.1} parent=1 // pred_fallthru
      _
    %1005 = vsyncpa [#allocation3], 1

</llo_original>
